<compile_context>
chip_gen: v7x
topology: tpu7x:2x2x1
jax: 0.10.0
libtpu: 0.0.40
codegen_flags: <defaults>
</compile_context>

<pallas_src>
import jax
import jax.numpy as jnp
from jax.experimental import pallas as pl
from jax.experimental.pallas import tpu as pltpu

LANE = 128
SUBLANE = 8
H1, H2 = 200, 300  # logical hidden widths of the PyTorch Actor


def _round_up(x, m):
    return ((x + m - 1) // m) * m


# --------------------------------------------------------------------------- #
# Kernel
# --------------------------------------------------------------------------- #
def actor_kernel(x_ref, w1_ref, b1_ref, w2_ref, b2_ref, w3_ref, b3_ref, o_ref):
    """One batch tile: y = tanh(relu(relu(x@W1+b1)@W2+b2)@W3+b3).

    Matmul operands are bf16 (full-rate MXU); accumulation and all elementwise
    work (bias add, relu, tanh) stay in f32.
    """
    x = x_ref[...]  # (TB, IN_PAD) bf16

    h1 = jnp.dot(x, w1_ref[...], preferred_element_type=jnp.float32) + b1_ref[...]
    h1 = jnp.maximum(h1, 0.0)

    h2 = jnp.dot(h1.astype(w2_ref.dtype), w2_ref[...],
                 preferred_element_type=jnp.float32) + b2_ref[...]
    h2 = jnp.maximum(h2, 0.0)

    h3 = jnp.dot(h2.astype(w3_ref.dtype), w3_ref[...],
                 preferred_element_type=jnp.float32) + b3_ref[...]
    o_ref[...] = jnp.tanh(h3).astype(o_ref.dtype)


# --------------------------------------------------------------------------- #
# Params: PyTorch-style init + TPU-friendly preparation (pad / transpose / cast)
# --------------------------------------------------------------------------- #
def init_actor_params(key, input_dim, output_dim):
    """nn.Linear-style: W is (out_features, in_features), b is (out_features,),
    both U(-1/sqrt(fan_in), 1/sqrt(fan_in))."""
    dims = [(input_dim, H1), (H1, H2), (H2, output_dim)]
    params = {}
    for i, (fan_in, fan_out) in enumerate(dims, start=1):
        key, kw, kb = jax.random.split(key, 3)
        bound = 1.0 / (fan_in ** 0.5)
        params[f"w{i}"] = jax.random.uniform(
            kw, (fan_out, fan_in), jnp.float32, minval=-bound, maxval=bound)
        params[f"b{i}"] = jax.random.uniform(
            kb, (fan_out,), jnp.float32, minval=-bound, maxval=bound)
    return params


def prepare_actor_params(params, input_dim, output_dim):
    """Transpose to (in, out), zero-pad every dim to a multiple of 128,
    cast weights to bf16 and biases to f32 rows (1, out_pad)."""
    in_pad = _round_up(input_dim, LANE)
    h1_pad = _round_up(H1, LANE)       # 256
    h2_pad = _round_up(H2, LANE)       # 384
    out_pad = _round_up(output_dim, LANE)

    def pad_wt(w, rows, cols):
        wt = w.T  # (in, out)
        wt = jnp.pad(wt, ((0, rows - wt.shape[0]), (0, cols - wt.shape[1])))
        return wt.astype(jnp.bfloat16)

    def pad_b(b, cols):
        b = jnp.pad(b, (0, cols - b.shape[0]))
        return b.reshape(1, cols).astype(jnp.float32)

    prepared = dict(
        w1=pad_wt(params["w1"], in_pad, h1_pad), b1=pad_b(params["b1"], h1_pad),
        w2=pad_wt(params["w2"], h1_pad, h2_pad), b2=pad_b(params["b2"], h2_pad),
        w3=pad_wt(params["w3"], h2_pad, out_pad), b3=pad_b(params["b3"], out_pad),
    )
    return prepared, (in_pad, h1_pad, h2_pad, out_pad)


# --------------------------------------------------------------------------- #
# Wrapper
# --------------------------------------------------------------------------- #
def actor_forward(state, prep, padded_dims, output_dim, *, max_batch_tile=256):
    """state: (B, input_dim) f32 -> action (B, output_dim) f32."""
    in_pad, h1_pad, h2_pad, out_pad = padded_dims
    B, in_dim = state.shape

    # Batch tile: multiple of 8 sublanes, capped so the per-step working set
    # stays at a few MiB (fits every generation incl. v7x's 64 MiB VMEM) and
    # Pallas can double-buffer the state/output DMA behind the matmuls.
    tb = min(max_batch_tile, _round_up(B, SUBLANE))
    b_pad = _round_up(B, tb)

    x = jnp.pad(state, ((0, b_pad - B), (0, in_pad - in_dim))).astype(jnp.bfloat16)

    resident = lambda i: (0, 0)  # weights/biases stay in VMEM across the grid
    in_specs = [
        pl.BlockSpec((tb, in_pad), lambda i: (i, 0)),
        pl.BlockSpec((in_pad, h1_pad), resident),
        pl.BlockSpec((1, h1_pad), resident),
        pl.BlockSpec((h1_pad, h2_pad), resident),
        pl.BlockSpec((1, h2_pad), resident),
        pl.BlockSpec((h2_pad, out_pad), resident),
        pl.BlockSpec((1, out_pad), resident),
    ]
    out_spec = pl.BlockSpec((tb, out_pad), lambda i: (i, 0))

    # VMEM budget: weights + double-buffered state/output tiles + f32
    # activations, with 2x headroom, capped at 32 MiB (safe scoped limit).
    weight_bytes = 2 * (in_pad * h1_pad + h1_pad * h2_pad + h2_pad * out_pad) \
        + 4 * (h1_pad + h2_pad + out_pad)
    io_bytes = 2 * (2 * tb * in_pad) + 2 * (4 * tb * out_pad)
    act_bytes = 4 * tb * (h1_pad + h2_pad + out_pad)
    vmem_limit = min(32 * 1024 * 1024,
                     2 * (2 * weight_bytes + io_bytes + act_bytes) + (1 << 20))

    flops = 2 * b_pad * (in_pad * h1_pad + h1_pad * h2_pad + h2_pad * out_pad)
    cost = pl.CostEstimate(
        flops=flops,
        transcendentals=b_pad * out_pad,  # tanh
        bytes_accessed=b_pad * in_pad * 2 + weight_bytes + b_pad * out_pad * 4,
    )

    out = pl.pallas_call(
        actor_kernel,
        out_shape=jax.ShapeDtypeStruct((b_pad, out_pad), jnp.float32),
        grid=(b_pad // tb,),
        in_specs=in_specs,
        out_specs=out_spec,
        compiler_params=pltpu.CompilerParams(
            dimension_semantics=("parallel",),
            vmem_limit_bytes=int(vmem_limit)),
        cost_estimate=cost,
    )(x, prep["w1"], prep["b1"], prep["w2"], prep["b2"], prep["w3"], prep["b3"])

    return out[:B, :output_dim]


# --------------------------------------------------------------------------- #
# Demo / correctness check
# --------------------------------------------------------------------------- #
if __name__ == "__main__":
    key = jax.random.PRNGKey(0)
    batch, input_dim, output_dim = 2, 32, 8

    k_params, k_state = jax.random.split(key)
    params = init_actor_params(k_params, input_dim, output_dim)
    state = jax.random.normal(k_state, (batch, input_dim), jnp.float32)

    prep, padded_dims = prepare_actor_params(params, input_dim, output_dim)
    action = actor_forward(state, prep, padded_dims, output_dim)
    action = jax.block_until_ready(action)

    # Pure-JAX reference mirroring the kernel precision: bf16 matmul inputs,
    # f32 accumulation and f32 elementwise (bias / relu / tanh).
    def bf16(v):
        return v.astype(jnp.bfloat16).astype(jnp.float32)

    h1 = jnp.maximum(bf16(state) @ bf16(params["w1"].T) + params["b1"], 0.0)
    h2 = jnp.maximum(bf16(h1) @ bf16(params["w2"].T) + params["b2"], 0.0)
    ref = jnp.tanh(bf16(h2) @ bf16(params["w3"].T) + params["b3"])

    # Full-f32 PyTorch-semantics reference (looser tolerance, bf16 matmuls).
    h1f = jnp.maximum(state @ params["w1"].T + params["b1"], 0.0)
    h2f = jnp.maximum(h1f @ params["w2"].T + params["b2"], 0.0)
    ref_f32 = jnp.tanh(h2f @ params["w3"].T + params["b3"])

    assert action.shape == (batch, output_dim)
    assert jnp.allclose(action, ref, atol=1e-3, rtol=1e-3), (
        float(jnp.max(jnp.abs(action - ref))))
    assert jnp.allclose(action, ref_f32, atol=2e-2, rtol=2e-2), (
        float(jnp.max(jnp.abs(action - ref_f32))))

    print("KERNEL_OK")
</pallas_src>

<mosaic_0001>
module attributes {stable_mosaic.version = 11 : i64} {
  func.func @actor_kernel(%arg0: i32, %arg1: memref<8x128xbf16, #tpu.memory_space<vmem>>, %arg2: memref<128x256xbf16, #tpu.memory_space<vmem>>, %arg3: memref<1x256xf32, #tpu.memory_space<vmem>>, %arg4: memref<256x384xbf16, #tpu.memory_space<vmem>>, %arg5: memref<1x384xf32, #tpu.memory_space<vmem>>, %arg6: memref<384x128xbf16, #tpu.memory_space<vmem>>, %arg7: memref<1x128xf32, #tpu.memory_space<vmem>>, %arg8: memref<8x128xf32, #tpu.memory_space<vmem>>) attributes {dimension_semantics = [#tpu.dimension_semantics<parallel>], iteration_bounds = array<i64: 1>, scalar_prefetch = 0 : i64, scratch_operands = 0 : i64, tpu.core_type = #tpu.core_type<tc>, window_params = [{transform_indices = @transform_0, window_bounds = array<i64: 8, 128>}, {pipeline_mode = #tpu.pipeline_mode<synchronous>, transform_indices = @transform_1, window_bounds = array<i64: 128, 256>}, {pipeline_mode = #tpu.pipeline_mode<synchronous>, transform_indices = @transform_2, window_bounds = array<i64: 1, 256>}, {pipeline_mode = #tpu.pipeline_mode<synchronous>, transform_indices = @transform_3, window_bounds = array<i64: 256, 384>}, {pipeline_mode = #tpu.pipeline_mode<synchronous>, transform_indices = @transform_4, window_bounds = array<i64: 1, 384>}, {pipeline_mode = #tpu.pipeline_mode<synchronous>, transform_indices = @transform_5, window_bounds = array<i64: 384, 128>}, {pipeline_mode = #tpu.pipeline_mode<synchronous>, transform_indices = @transform_6, window_bounds = array<i64: 1, 128>}, {transform_indices = @transform_7, window_bounds = array<i64: 8, 128>}]} {
    %c0 = arith.constant 0 : index
    %c0_0 = arith.constant 0 : index
    %0 = vector.load %arg1[%c0, %c0_0] : memref<8x128xbf16, #tpu.memory_space<vmem>>, vector<8x128xbf16>
    %c0_1 = arith.constant 0 : index
    %c0_2 = arith.constant 0 : index
    %1 = vector.load %arg2[%c0_1, %c0_2] : memref<128x256xbf16, #tpu.memory_space<vmem>>, vector<128x256xbf16>
    %cst = arith.constant dense<0.000000e+00> : vector<8x256xf32>
    %2 = tpu.matmul %0, %1, %cst {dimension_numbers = #tpu.dot_dimension_numbers<[1], [0], [0], [1], [0, 0, 1, 1], [], []>} : vector<8x128xbf16>, vector<128x256xbf16>, vector<8x256xf32> -> vector<8x256xf32>
    %c0_3 = arith.constant 0 : index
    %c0_4 = arith.constant 0 : index
    %3 = vector.load %arg3[%c0_3, %c0_4] : memref<1x256xf32, #tpu.memory_space<vmem>>, vector<1x256xf32>
    %4 = vector.broadcast %3 : vector<1x256xf32> to vector<8x256xf32>
    %5 = arith.addf %2, %4 : vector<8x256xf32>
    %cst_5 = arith.constant 0.000000e+00 : f32
    %6 = vector.broadcast %cst_5 : f32 to vector<8x256xf32>
    %7 = arith.maximumf %5, %6 : vector<8x256xf32>
    %8 = arith.truncf %7 : vector<8x256xf32> to vector<8x256xbf16>
    %c0_6 = arith.constant 0 : index
    %c0_7 = arith.constant 0 : index
    %9 = vector.load %arg4[%c0_6, %c0_7] : memref<256x384xbf16, #tpu.memory_space<vmem>>, vector<256x384xbf16>
    %cst_8 = arith.constant dense<0.000000e+00> : vector<8x384xf32>
    %10 = tpu.matmul %8, %9, %cst_8 {dimension_numbers = #tpu.dot_dimension_numbers<[1], [0], [0], [1], [0, 0, 1, 1], [], []>} : vector<8x256xbf16>, vector<256x384xbf16>, vector<8x384xf32> -> vector<8x384xf32>
    %c0_9 = arith.constant 0 : index
    %c0_10 = arith.constant 0 : index
    %11 = vector.load %arg5[%c0_9, %c0_10] : memref<1x384xf32, #tpu.memory_space<vmem>>, vector<1x384xf32>
    %12 = vector.broadcast %11 : vector<1x384xf32> to vector<8x384xf32>
    %13 = arith.addf %10, %12 : vector<8x384xf32>
    %cst_11 = arith.constant 0.000000e+00 : f32
    %14 = vector.broadcast %cst_11 : f32 to vector<8x384xf32>
    %15 = arith.maximumf %13, %14 : vector<8x384xf32>
    %16 = arith.truncf %15 : vector<8x384xf32> to vector<8x384xbf16>
    %c0_12 = arith.constant 0 : index
    %c0_13 = arith.constant 0 : index
    %17 = vector.load %arg6[%c0_12, %c0_13] : memref<384x128xbf16, #tpu.memory_space<vmem>>, vector<384x128xbf16>
    %cst_14 = arith.constant dense<0.000000e+00> : vector<8x128xf32>
    %18 = tpu.matmul %16, %17, %cst_14 {dimension_numbers = #tpu.dot_dimension_numbers<[1], [0], [0], [1], [0, 0, 1, 1], [], []>} : vector<8x384xbf16>, vector<384x128xbf16>, vector<8x128xf32> -> vector<8x128xf32>
    %c0_15 = arith.constant 0 : index
    %c0_16 = arith.constant 0 : index
    %19 = vector.load %arg7[%c0_15, %c0_16] : memref<1x128xf32, #tpu.memory_space<vmem>>, vector<1x128xf32>
    %20 = vector.broadcast %19 : vector<1x128xf32> to vector<8x128xf32>
    %21 = arith.addf %18, %20 : vector<8x128xf32>
    %22 = math.tanh %21 : vector<8x128xf32>
    %c0_17 = arith.constant 0 : index
    %c0_18 = arith.constant 0 : index
    %23 = vector.load %arg8[%c0_17, %c0_18] : memref<8x128xf32, #tpu.memory_space<vmem>>, vector<8x128xf32>
    tpu.vector_store %arg8[%c0_17, %c0_18], %22 {strides = array<i32>} : memref<8x128xf32, #tpu.memory_space<vmem>>, vector<8x128xf32>,
    return
  }
  func.func @transform_0(%arg0: i32) -> (i32, i32) {
    %c0_i32 = arith.constant 0 : i32
    %c0_i32_0 = arith.constant 0 : i32
    return %arg0, %c0_i32 : i32, i32
  }
  func.func @transform_1(%arg0: i32) -> (i32, i32) {
    %c0_i32 = arith.constant 0 : i32
    %c0_i32_0 = arith.constant 0 : i32
    %c0_i32_1 = arith.constant 0 : i32
    return %c0_i32, %c0_i32_0 : i32, i32
  }
  func.func @transform_2(%arg0: i32) -> (i32, i32) {
    %c0_i32 = arith.constant 0 : i32
    %c0_i32_0 = arith.constant 0 : i32
    %c0_i32_1 = arith.constant 0 : i32
    return %c0_i32, %c0_i32_0 : i32, i32
  }
  func.func @transform_3(%arg0: i32) -> (i32, i32) {
    %c0_i32 = arith.constant 0 : i32
    %c0_i32_0 = arith.constant 0 : i32
    %c0_i32_1 = arith.constant 0 : i32
    return %c0_i32, %c0_i32_0 : i32, i32
  }
  func.func @transform_4(%arg0: i32) -> (i32, i32) {
    %c0_i32 = arith.constant 0 : i32
    %c0_i32_0 = arith.constant 0 : i32
    %c0_i32_1 = arith.constant 0 : i32
    return %c0_i32, %c0_i32_0 : i32, i32
  }
  func.func @transform_5(%arg0: i32) -> (i32, i32) {
    %c0_i32 = arith.constant 0 : i32
    %c0_i32_0 = arith.constant 0 : i32
    %c0_i32_1 = arith.constant 0 : i32
    return %c0_i32, %c0_i32_0 : i32, i32
  }
  func.func @transform_6(%arg0: i32) -> (i32, i32) {
    %c0_i32 = arith.constant 0 : i32
    %c0_i32_0 = arith.constant 0 : i32
    %c0_i32_1 = arith.constant 0 : i32
    return %c0_i32, %c0_i32_0 : i32, i32
  }
  func.func @transform_7(%arg0: i32) -> (i32, i32) {
    %c0_i32 = arith.constant 0 : i32
    %c0_i32_0 = arith.constant 0 : i32
    return %arg0, %c0_i32 : i32, i32
  }
}

</mosaic_0001>

<llo_original>
// kernel: tpu_custom_call.1
$region0: #{tpu_custom_call.1}
  #allocation0 [shape = 'u32[]', space=smem, size = 0x4, offset = 0x4, fixed_abs, tag = 'smem constant byte address 0x4 - core index']
  #allocation1 [shape = 'u32[144,128]{1,0:T(1,128)}', space=vmem, size = 0x12000, scoped, tag = 'internal scratch']
  %s0 = inlined_call_operand.hbm [shape: bf16[8,128], index: 0, kind: input, shape index: {}]
  %s1 = inlined_call_operand.hbm [shape: bf16[128,256], index: 1, kind: input, shape index: {}]
  %s2 = inlined_call_operand.vmem [shape: f32[1,256], index: 2, kind: input, shape index: {}]
  %s3 = inlined_call_operand.hbm [shape: bf16[256,384], index: 3, kind: input, shape index: {}]
  %s4 = inlined_call_operand.vmem [shape: f32[1,384], index: 4, kind: input, shape index: {}]
  %s5 = inlined_call_operand.hbm [shape: bf16[384,128], index: 5, kind: input, shape index: {}]
  %s6 = inlined_call_operand.vmem [shape: f32[1,128], index: 6, kind: input, shape index: {}]
  %s7 = inlined_call_operand.hbm [shape: f32[8,128], index: 7, kind: output, shape index: {}]
  %s8 = sld [smem:[#allocation0]]
  $region54: #{tpu_custom_call.1} parent=0
    _
  %s10 = ssub.s32 1, %s8
  %s11 = scalar_select 0, %s10, %s8
  $region1: #{tpu_custom_call.1} parent=0
    #allocation2 [shape = 'u8[2048]{0}', space=vmem, size = 0x800, scoped, tag = 'input window, operand 0, single buffered']
    #allocation3 [shape = 's32[1]{0}', space=sflag, size = 0x4, scoped, tag = 'scoped memory for tpu_custom_call.1']
    #allocation4 [shape = 's32[1]{0}', space=sflag, size = 0x4, scoped, tag = 'scoped memory for tpu_custom_call.1']
    #allocation5 [shape = 'u8[65536]{0}', space=vmem, size = 0x10000, scoped, tag = 'input window, operand 1, single buffered']
    #allocation6 [shape = 's32[1]{0}', space=sflag, size = 0x4, scoped, tag = 'scoped memory for tpu_custom_call.1']
    #allocation7 [shape = 'u8[196608]{0}', space=vmem, size = 0x30000, scoped, tag = 'input window, operand 3, single buffered']
    #allocation8 [shape = 'u8[98304]{0}', space=vmem, size = 0x18000, scoped, tag = 'input window, operand 5, single buffered']
    #allocation9 [shape = 's32[1]{0}', space=sflag, size = 0x4, scoped, tag = 'scoped memory for tpu_custom_call.1']
    #allocation10 [shape = 'u8[4096]{0}', space=vmem, size = 0x1000, scoped, tag = 'output window, operand 0, single buffered']
    %12 = vsyncpa [#allocation3], 0
    %13 = vsyncpa [#allocation6], 0
    %14 = vsyncpa [#allocation9], 0
    %15 = vsyncpa [#allocation4], 0
    // Predicated region
    $region2: #{tpu_custom_call.1} parent=1 // pred_check
      _
    $region3: #{tpu_custom_call.1} parent=1 // pred_check_branch
      %17 = sbr.rel (0) target = $region5
    $region4: #{tpu_custom_call.1} parent=1 // pred_region
      %s19 = ssub.s32 64, 64
      %20 = vsyncadd [#allocation3], %s19
      %s22 = sshll.u32 [#allocation2], 4
      %s23 = int_to_ptr.vmem [resolvable:$true] %s22
      %25 = dma.hbm_to_vmem [thread:$0]  %s0, 64, %s23, [#allocation3]
    $region5: #{tpu_custom_call.1} parent=1 // pred_fallthru
      _
    // Predicated region
    $region6: #{tpu_custom_call.1} parent=1 // pred_check
      _
    $region7: #{tpu_custom_call.1} parent=1 // pred_check_branch
      %27 = sbr.rel (0) target = $region9
    $region8: #{tpu_custom_call.1} parent=1 // pred_region
      %s29 = ssub.s32 2048, 2048
      %30 = vsyncadd [#allocation6], %s29
      %s31 = sshll.u32 [#allocation5], 4
      %s32 = int_to_ptr.vmem [resolvable:$true] %s31
      %37 = dma.hbm_to_vmem [thread:$0]  %s1, 2048, %s32, [#allocation6], 128, 128, 8
    $region9: #{tpu_custom_call.1} parent=1 // pred_fallthru
      _
    // Predicated region
    $region10: #{tpu_custom_call.1} parent=1 // pred_check
      _
    $region11: #{tpu_custom_call.1} parent=1 // pred_check_branch
      %39 = sbr.rel (0) target = $region13
    $region12: #{tpu_custom_call.1} parent=1 // pred_region
      _
    $region13: #{tpu_custom_call.1} parent=1 // pred_fallthru
      _
    // Predicated region
    $region14: #{tpu_custom_call.1} parent=1 // pred_check
      _
    $region15: #{tpu_custom_call.1} parent=1 // pred_check_branch
      %41 = sbr.rel (0) target = $region17
    $region16: #{tpu_custom_call.1} parent=1 // pred_region
      %s43 = ssub.s32 6144, 6144
      %44 = vsyncadd [#allocation6], %s43
      %s45 = sshll.u32 [#allocation7], 4
      %s46 = int_to_ptr.vmem [resolvable:$true] %s45
      %51 = dma.hbm_to_vmem [thread:$0]  %s3, 6144, %s46, [#allocation6], 192, 192, 12
    $region17: #{tpu_custom_call.1} parent=1 // pred_fallthru
      _
    // Predicated region
    $region18: #{tpu_custom_call.1} parent=1 // pred_check
      _
    $region19: #{tpu_custom_call.1} parent=1 // pred_check_branch
      %53 = sbr.rel (0) target = $region21
    $region20: #{tpu_custom_call.1} parent=1 // pred_region
      _
    $region21: #{tpu_custom_call.1} parent=1 // pred_fallthru
      _
    // Predicated region
    $region22: #{tpu_custom_call.1} parent=1 // pred_check
      _
    $region23: #{tpu_custom_call.1} parent=1 // pred_check_branch
      %55 = sbr.rel (0) target = $region25
    $region24: #{tpu_custom_call.1} parent=1 // pred_region
      %s57 = ssub.s32 3072, 3072
      %58 = vsyncadd [#allocation9], %s57
      %s59 = sshll.u32 [#allocation8], 4
      %s60 = int_to_ptr.vmem [resolvable:$true] %s59
      %65 = dma.hbm_to_vmem [thread:$0]  %s5, 3072, %s60, [#allocation9], 64, 64, 4
    $region25: #{tpu_custom_call.1} parent=1 // pred_fallthru
      _
    // Predicated region
    $region26: #{tpu_custom_call.1} parent=1 // pred_check
      _
    $region27: #{tpu_custom_call.1} parent=1 // pred_check_branch
      %67 = sbr.rel (0) target = $region29
    $region28: #{tpu_custom_call.1} parent=1 // pred_region
      _
    $region29: #{tpu_custom_call.1} parent=1 // pred_fallthru
      _
    // Predicated region
    $region30: #{tpu_custom_call.1} parent=1 // pred_check
      _
    $region31: #{tpu_custom_call.1} parent=1 // pred_check_branch
      %69 = sbr.rel (0) target = $region33
    $region32: #{tpu_custom_call.1} parent=1 // pred_region
      %70 = dma.done [#allocation3], 64
    $region33: #{tpu_custom_call.1} parent=1 // pred_fallthru
      _
    // Predicated region
    $region34: #{tpu_custom_call.1} parent=1 // pred_check
      _
    $region35: #{tpu_custom_call.1} parent=1 // pred_check_branch
      %72 = sbr.rel (0) target = $region37
    $region36: #{tpu_custom_call.1} parent=1 // pred_region
      %73 = dma.done [#allocation6], 2048
    $region37: #{tpu_custom_call.1} parent=1 // pred_fallthru
      _
    // Predicated region
    $region38: #{tpu_custom_call.1} parent=1 // pred_check
      _
    $region39: #{tpu_custom_call.1} parent=1 // pred_check_branch
      %75 = sbr.rel (0) target = $region41
    $region40: #{tpu_custom_call.1} parent=1 // pred_region
      %76 = dma.done [#allocation6], 6144
    $region41: #{tpu_custom_call.1} parent=1 // pred_fallthru
      _
    // Predicated region
    $region42: #{tpu_custom_call.1} parent=1 // pred_check
      _
    $region43: #{tpu_custom_call.1} parent=1 // pred_check_branch
      %78 = sbr.rel (0) target = $region45
    $region44: #{tpu_custom_call.1} parent=1 // pred_region
      %79 = dma.done [#allocation9], 3072
    $region45: #{tpu_custom_call.1} parent=1 // pred_fallthru
      _
    %v81 = vld [vmem:[#allocation2] sm:$0xf]
    %v82 = vld [vmem:[#allocation5] sm:$0xff]
    %v83 = vld [vmem:[#allocation5 + $0x8] sm:$0xff]
    %v84 = vld [vmem:[#allocation5 + $0x10] sm:$0xff]
    %v85 = vld [vmem:[#allocation5 + $0x18] sm:$0xff]
    %v86 = vld [vmem:[#allocation5 + $0x20] sm:$0xff]
    %v87 = vld [vmem:[#allocation5 + $0x28] sm:$0xff]
    %v88 = vld [vmem:[#allocation5 + $0x30] sm:$0xff]
    %v89 = vld [vmem:[#allocation5 + $0x38] sm:$0xff]
    %v90 = vld [vmem:[#allocation5 + $0x40] sm:$0xff]
    %v91 = vld [vmem:[#allocation5 + $0x48] sm:$0xff]
    %v92 = vld [vmem:[#allocation5 + $0x50] sm:$0xff]
    %v93 = vld [vmem:[#allocation5 + $0x58] sm:$0xff]
    %v94 = vld [vmem:[#allocation5 + $0x60] sm:$0xff]
    %v95 = vld [vmem:[#allocation5 + $0x68] sm:$0xff]
    %v96 = vld [vmem:[#allocation5 + $0x70] sm:$0xff]
    %v97 = vld [vmem:[#allocation5 + $0x78] sm:$0xff]
    %v98 = vld [vmem:[%s2] sm:$0x3]
    %v100 = vlaneseq
    %v101 = vshrl.u32 %v100, 7
    %v102 = vsub.s32 0, %v101
    %v103 = vrot.slane %v98, %v102
    %v104 = vlaneseq
    %v105 = vshrl.u32 %v104, 7
    %v106 = vsub.s32 1, %v105
    %v107 = vrot.slane %v98, %v106
    %v126 = vunpack.c.l.b16 %v82
    %v127 = vunpack.c.h.b16 %v82
    %v128 = vunpack.c.l.b16 %v83
    %v129 = vunpack.c.h.b16 %v83
    %v130 = vunpack.c.l.b16 %v84
    %v131 = vunpack.c.h.b16 %v84
    %v132 = vunpack.c.l.b16 %v85
    %v133 = vunpack.c.h.b16 %v85
    %v134 = vunpack.c.l.b16 %v86
    %v135 = vunpack.c.h.b16 %v86
    %v136 = vunpack.c.l.b16 %v87
    %v137 = vunpack.c.h.b16 %v87
    %v138 = vunpack.c.l.b16 %v88
    %v139 = vunpack.c.h.b16 %v88
    %v140 = vunpack.c.l.b16 %v89
    %v141 = vunpack.c.h.b16 %v89
    %v142 = vunpack.c.l.b16 %v90
    %v143 = vunpack.c.h.b16 %v90
    %v144 = vunpack.c.l.b16 %v91
    %v145 = vunpack.c.h.b16 %v91
    %v146 = vunpack.c.l.b16 %v92
    %v147 = vunpack.c.h.b16 %v92
    %v148 = vunpack.c.l.b16 %v93
    %v149 = vunpack.c.h.b16 %v93
    %v150 = vunpack.c.l.b16 %v94
    %v151 = vunpack.c.h.b16 %v94
    %v152 = vunpack.c.l.b16 %v95
    %v153 = vunpack.c.h.b16 %v95
    %v154 = vunpack.c.l.b16 %v96
    %v155 = vunpack.c.h.b16 %v96
    %v156 = vunpack.c.l.b16 %v97
    %v157 = vunpack.c.h.b16 %v97
    %v158 = vpack.c.b16 %v128, %v126
    %v159 = vpack.c.b16 %v129, %v127
    %v160 = vpack.c.b16 %v132, %v130
    %v161 = vpack.c.b16 %v133, %v131
    %v162 = vpack.c.b16 %v136, %v134
    %v163 = vpack.c.b16 %v137, %v135
    %v164 = vpack.c.b16 %v140, %v138
    %v165 = vpack.c.b16 %v141, %v139
    %v166 = vpack.c.b16 %v144, %v142
    %v167 = vpack.c.b16 %v145, %v143
    %v168 = vpack.c.b16 %v148, %v146
    %v169 = vpack.c.b16 %v149, %v147
    %v170 = vpack.c.b16 %v152, %v150
    %v171 = vpack.c.b16 %v153, %v151
    %v172 = vpack.c.b16 %v156, %v154
    %v173 = vpack.c.b16 %v157, %v155
    %190 = vmatprep.subr.bf16.mxu0 %v159
    %191 = vmatpush1.bf16.msra.mxu0 %v158
    %192 = vmatprep.subr.bf16.mxu0 %v161
    %193 = vmatpush1.bf16.msra.mxu0 %v160
    %194 = vmatprep.subr.bf16.mxu0 %v163
    %195 = vmatpush1.bf16.msra.mxu0 %v162
    %196 = vmatprep.subr.bf16.mxu0 %v165
    %197 = vmatpush1.bf16.msra.mxu0 %v164
    %198 = vmatprep.subr.bf16.mxu0 %v167
    %199 = vmatpush1.bf16.msra.mxu0 %v166
    %200 = vmatprep.subr.bf16.mxu0 %v169
    %201 = vmatpush1.bf16.msra.mxu0 %v168
    %202 = vmatprep.subr.bf16.mxu0 %v171
    %203 = vmatpush1.bf16.msra.mxu0 %v170
    %204 = vmatprep.subr.bf16.mxu0 %v173
    %205 = vmatpush1.bf16.msra.mxu0 %v172
    %206 = vmatprep.subr.bf16.mxu0 0
    %207 = vmatpush1.bf16.msra.mxu0 0
    %208 = vmatprep.subr.bf16.mxu0 0
    %209 = vmatpush1.bf16.msra.mxu0 0
    %210 = vmatprep.subr.bf16.mxu0 0
    %211 = vmatpush1.bf16.msra.mxu0 0
    %212 = vmatprep.subr.bf16.mxu0 0
    %213 = vmatpush1.bf16.msra.mxu0 0
    %214 = vmatprep.subr.bf16.mxu0 0
    %215 = vmatpush1.bf16.msra.mxu0 0
    %216 = vmatprep.subr.bf16.mxu0 0
    %217 = vmatpush1.bf16.msra.mxu0 0
    %218 = vmatprep.subr.bf16.mxu0 0
    %219 = vmatpush1.bf16.msra.mxu0 0
    %220 = vmatprep.subr.bf16.mxu0 0
    %221 = vmatpush1.bf16.msra.mxu0 0
    %222 = vmatprep.mubr.bf16.mxu0 0
    %223 = vmatmul.mubr.bf16.gmra.mrb[0].mxu0 %v81
    %v224 = vpop.f32.mrb[0].mxu0
    %v225 = vadd.f32 %v103, %v224
    %v226 = vpop.f32.mrb[0].mxu0
    %v227 = vadd.f32 %v107, %v226
    %v228 = vpop.f32.mrb[0].mxu0
    %v229 = vpop.f32.mrb[0].mxu0
    %230 = vdwg.mxu0
    %v231 = vmax.f32 %v225, 0.0
    %v232 = vmax.f32 %v227, 0.0
    %v233 = vpack.c.bf16 %v231, %v231
    %v234 = vpack.c.bf16 %v232, %v232
    %v235 = vld [vmem:[#allocation7] sm:$0xff]
    %v236 = vld [vmem:[#allocation7 + $0x8] sm:$0xf]
    %v237 = vld [vmem:[#allocation7 + $0xc] sm:$0xff]
    %v238 = vld [vmem:[#allocation7 + $0x14] sm:$0xf]
    %v239 = vld [vmem:[#allocation7 + $0x18] sm:$0xff]
    %v240 = vld [vmem:[#allocation7 + $0x20] sm:$0xf]
    %v241 = vld [vmem:[#allocation7 + $0x24] sm:$0xff]
    %v242 = vld [vmem:[#allocation7 + $0x2c] sm:$0xf]
    %v243 = vld [vmem:[#allocation7 + $0x30] sm:$0xff]
    %v244 = vld [vmem:[#allocation7 + $0x38] sm:$0xf]
    %v245 = vld [vmem:[#allocation7 + $0x3c] sm:$0xff]
    %v246 = vld [vmem:[#allocation7 + $0x44] sm:$0xf]
    %v247 = vld [vmem:[#allocation7 + $0x48] sm:$0xff]
    %v248 = vld [vmem:[#allocation7 + $0x50] sm:$0xf]
    %v249 = vld [vmem:[#allocation7 + $0x54] sm:$0xff]
    %v250 = vld [vmem:[#allocation7 + $0x5c] sm:$0xf]
    %v251 = vld [vmem:[#allocation7 + $0x60] sm:$0xff]
    %v252 = vld [vmem:[#allocation7 + $0x68] sm:$0xf]
    %v253 = vld [vmem:[#allocation7 + $0x6c] sm:$0xff]
    %v254 = vld [vmem:[#allocation7 + $0x74] sm:$0xf]
    %v255 = vld [vmem:[#allocation7 + $0x78] sm:$0xff]
    %v256 = vld [vmem:[#allocation7 + $0x80] sm:$0xf]
    %v257 = vld [vmem:[#allocation7 + $0x84] sm:$0xff]
    %v258 = vld [vmem:[#allocation7 + $0x8c] sm:$0xf]
    %v259 = vld [vmem:[#allocation7 + $0x90] sm:$0xff]
    %v260 = vld [vmem:[#allocation7 + $0x98] sm:$0xf]
    %v261 = vld [vmem:[#allocation7 + $0x9c] sm:$0xff]
    %v262 = vld [vmem:[#allocation7 + $0xa4] sm:$0xf]
    %v263 = vld [vmem:[#allocation7 + $0xa8] sm:$0xff]
    %v264 = vld [vmem:[#allocation7 + $0xb0] sm:$0xf]
    %v265 = vld [vmem:[#allocation7 + $0xb4] sm:$0xff]
    %v266 = vld [vmem:[#allocation7 + $0xbc] sm:$0xf]
    %v267 = vld [vmem:[#allocation7 + $0xc0] sm:$0xff]
    %v268 = vld [vmem:[#allocation7 + $0xc8] sm:$0xf]
    %v269 = vld [vmem:[#allocation7 + $0xcc] sm:$0xff]
    %v270 = vld [vmem:[#allocation7 + $0xd4] sm:$0xf]
    %v271 = vld [vmem:[#allocation7 + $0xd8] sm:$0xff]
    %v272 = vld [vmem:[#allocation7 + $0xe0] sm:$0xf]
    %v273 = vld [vmem:[#allocation7 + $0xe4] sm:$0xff]
    %v274 = vld [vmem:[#allocation7 + $0xec] sm:$0xf]
    %v275 = vld [vmem:[#allocation7 + $0xf0] sm:$0xff]
    %v276 = vld [vmem:[#allocation7 + $0xf8] sm:$0xf]
    %v277 = vld [vmem:[#allocation7 + $0xfc] sm:$0xff]
    %v278 = vld [vmem:[#allocation7 + $0x104] sm:$0xf]
    %v279 = vld [vmem:[#allocation7 + $0x108] sm:$0xff]
    %v280 = vld [vmem:[#allocation7 + $0x110] sm:$0xf]
    %v281 = vld [vmem:[#allocation7 + $0x114] sm:$0xff]
    %v282 = vld [vmem:[#allocation7 + $0x11c] sm:$0xf]
    %v283 = vld [vmem:[#allocation7 + $0x120] sm:$0xff]
    %v284 = vld [vmem:[#allocation7 + $0x128] sm:$0xf]
    %v285 = vld [vmem:[#allocation7 + $0x12c] sm:$0xff]
    %v286 = vld [vmem:[#allocation7 + $0x134] sm:$0xf]
    %v287 = vld [vmem:[#allocation7 + $0x138] sm:$0xff]
    %v288 = vld [vmem:[#allocation7 + $0x140] sm:$0xf]
    %v289 = vld [vmem:[#allocation7 + $0x144] sm:$0xff]
    %v290 = vld [vmem:[#allocation7 + $0x14c] sm:$0xf]
    %v291 = vld [vmem:[#allocation7 + $0x150] sm:$0xff]
    %v292 = vld [vmem:[#allocation7 + $0x158] sm:$0xf]
    %v293 = vld [vmem:[#allocation7 + $0x15c] sm:$0xff]
    %v294 = vld [vmem:[#allocation7 + $0x164] sm:$0xf]
    %v295 = vld [vmem:[#allocation7 + $0x168] sm:$0xff]
    %v296 = vld [vmem:[#allocation7 + $0x170] sm:$0xf]
    %v297 = vld [vmem:[#allocation7 + $0x174] sm:$0xff]
    %v298 = vld [vmem:[#allocation7 + $0x17c] sm:$0xf]
    %v299 = vld [vmem:[%s4] sm:$0x7]
    %v301 = vlaneseq
    %v302 = vshrl.u32 %v301, 7
    %v303 = vsub.s32 0, %v302
    %v304 = vrot.slane %v299, %v303
    %v305 = vlaneseq
    %v306 = vshrl.u32 %v305, 7
    %v307 = vsub.s32 1, %v306
    %v308 = vrot.slane %v299, %v307
    %v309 = vlaneseq
    %v310 = vshrl.u32 %v309, 7
    %v311 = vsub.s32 2, %v310
    %v312 = vrot.slane %v299, %v311
    %v380 = vunpack.c.l.b16 %v235
    %v381 = vunpack.c.h.b16 %v235
    %v382 = vunpack.c.l.b16 %v236
    %v383 = vunpack.c.l.b16 %v237
    %v384 = vunpack.c.h.b16 %v237
    %v385 = vunpack.c.l.b16 %v238
    %v386 = vunpack.c.l.b16 %v239
    %v387 = vunpack.c.h.b16 %v239
    %v388 = vunpack.c.l.b16 %v240
    %v389 = vunpack.c.l.b16 %v241
    %v390 = vunpack.c.h.b16 %v241
    %v391 = vunpack.c.l.b16 %v242
    %v392 = vunpack.c.l.b16 %v243
    %v393 = vunpack.c.h.b16 %v243
    %v394 = vunpack.c.l.b16 %v244
    %v395 = vunpack.c.l.b16 %v245
    %v396 = vunpack.c.h.b16 %v245
    %v397 = vunpack.c.l.b16 %v246
    %v398 = vunpack.c.l.b16 %v247
    %v399 = vunpack.c.h.b16 %v247
    %v400 = vunpack.c.l.b16 %v248
    %v401 = vunpack.c.l.b16 %v249
    %v402 = vunpack.c.h.b16 %v249
    %v403 = vunpack.c.l.b16 %v250
    %v404 = vunpack.c.l.b16 %v251
    %v405 = vunpack.c.h.b16 %v251
    %v406 = vunpack.c.l.b16 %v252
    %v407 = vunpack.c.l.b16 %v253
    %v408 = vunpack.c.h.b16 %v253
    %v409 = vunpack.c.l.b16 %v254
    %v410 = vunpack.c.l.b16 %v255
    %v411 = vunpack.c.h.b16 %v255
    %v412 = vunpack.c.l.b16 %v256
    %v413 = vunpack.c.l.b16 %v257
    %v414 = vunpack.c.h.b16 %v257
    %v415 = vunpack.c.l.b16 %v258
    %v416 = vunpack.c.l.b16 %v259
    %v417 = vunpack.c.h.b16 %v259
    %v418 = vunpack.c.l.b16 %v260
    %v419 = vunpack.c.l.b16 %v261
    %v420 = vunpack.c.h.b16 %v261
    %v421 = vunpack.c.l.b16 %v262
    %v422 = vunpack.c.l.b16 %v263
    %v423 = vunpack.c.h.b16 %v263
    %v424 = vunpack.c.l.b16 %v264
    %v425 = vunpack.c.l.b16 %v265
    %v426 = vunpack.c.h.b16 %v265
    %v427 = vunpack.c.l.b16 %v266
    %v428 = vunpack.c.l.b16 %v267
    %v429 = vunpack.c.h.b16 %v267
    %v430 = vunpack.c.l.b16 %v268
    %v431 = vunpack.c.l.b16 %v269
    %v432 = vunpack.c.h.b16 %v269
    %v433 = vunpack.c.l.b16 %v270
    %v434 = vunpack.c.l.b16 %v271
    %v435 = vunpack.c.h.b16 %v271
    %v436 = vunpack.c.l.b16 %v272
    %v437 = vunpack.c.l.b16 %v273
    %v438 = vunpack.c.h.b16 %v273
    %v439 = vunpack.c.l.b16 %v274
    %v440 = vunpack.c.l.b16 %v275
    %v441 = vunpack.c.h.b16 %v275
    %v442 = vunpack.c.l.b16 %v276
    %v443 = vunpack.c.l.b16 %v277
    %v444 = vunpack.c.h.b16 %v277
    %v445 = vunpack.c.l.b16 %v278
    %v446 = vunpack.c.l.b16 %v279
    %v447 = vunpack.c.h.b16 %v279
    %v448 = vunpack.c.l.b16 %v280
    %v449 = vunpack.c.l.b16 %v281
    %v450 = vunpack.c.h.b16 %v281
    %v451 = vunpack.c.l.b16 %v282
    %v452 = vunpack.c.l.b16 %v283
    %v453 = vunpack.c.h.b16 %v283
    %v454 = vunpack.c.l.b16 %v284
    %v455 = vunpack.c.l.b16 %v285
    %v456 = vunpack.c.h.b16 %v285
    %v457 = vunpack.c.l.b16 %v286
    %v458 = vunpack.c.l.b16 %v287
    %v459 = vunpack.c.h.b16 %v287
    %v460 = vunpack.c.l.b16 %v288
    %v461 = vunpack.c.l.b16 %v289
    %v462 = vunpack.c.h.b16 %v289
    %v463 = vunpack.c.l.b16 %v290
    %v464 = vunpack.c.l.b16 %v291
    %v465 = vunpack.c.h.b16 %v291
    %v466 = vunpack.c.l.b16 %v292
    %v467 = vunpack.c.l.b16 %v293
    %v468 = vunpack.c.h.b16 %v293
    %v469 = vunpack.c.l.b16 %v294
    %v470 = vunpack.c.l.b16 %v295
    %v471 = vunpack.c.h.b16 %v295
    %v472 = vunpack.c.l.b16 %v296
    %v473 = vunpack.c.l.b16 %v297
    %v474 = vunpack.c.h.b16 %v297
    %v475 = vunpack.c.l.b16 %v298
    %v476 = vpack.c.b16 %v383, %v380
    %v477 = vpack.c.b16 %v384, %v381
    %v478 = vpack.c.b16 %v385, %v382
    %v479 = vpack.c.b16 %v389, %v386
    %v480 = vpack.c.b16 %v390, %v387
    %v481 = vpack.c.b16 %v391, %v388
    %v482 = vpack.c.b16 %v395, %v392
    %v483 = vpack.c.b16 %v396, %v393
    %v484 = vpack.c.b16 %v397, %v394
    %v485 = vpack.c.b16 %v401, %v398
    %v486 = vpack.c.b16 %v402, %v399
    %v487 = vpack.c.b16 %v403, %v400
    %v488 = vpack.c.b16 %v407, %v404
    %v489 = vpack.c.b16 %v408, %v405
    %v490 = vpack.c.b16 %v409, %v406
    %v491 = vpack.c.b16 %v413, %v410
    %v492 = vpack.c.b16 %v414, %v411
    %v493 = vpack.c.b16 %v415, %v412
    %v494 = vpack.c.b16 %v419, %v416
    %v495 = vpack.c.b16 %v420, %v417
    %v496 = vpack.c.b16 %v421, %v418
    %v497 = vpack.c.b16 %v425, %v422
    %v498 = vpack.c.b16 %v426, %v423
    %v499 = vpack.c.b16 %v427, %v424
    %v500 = vpack.c.b16 %v431, %v428
    %v501 = vpack.c.b16 %v432, %v429
    %v502 = vpack.c.b16 %v433, %v430
    %v503 = vpack.c.b16 %v437, %v434
    %v504 = vpack.c.b16 %v438, %v435
    %v505 = vpack.c.b16 %v439, %v436
    %v506 = vpack.c.b16 %v443, %v440
    %v507 = vpack.c.b16 %v444, %v441
    %v508 = vpack.c.b16 %v445, %v442
    %v509 = vpack.c.b16 %v449, %v446
    %v510 = vpack.c.b16 %v450, %v447
    %v511 = vpack.c.b16 %v451, %v448
    %v512 = vpack.c.b16 %v455, %v452
    %v513 = vpack.c.b16 %v456, %v453
    %v514 = vpack.c.b16 %v457, %v454
    %v515 = vpack.c.b16 %v461, %v458
    %v516 = vpack.c.b16 %v462, %v459
    %v517 = vpack.c.b16 %v463, %v460
    %v518 = vpack.c.b16 %v467, %v464
    %v519 = vpack.c.b16 %v468, %v465
    %v520 = vpack.c.b16 %v469, %v466
    %v521 = vpack.c.b16 %v473, %v470
    %v522 = vpack.c.b16 %v474, %v471
    %v523 = vpack.c.b16 %v475, %v472
    %572 = vmatprep.subr.bf16.mxu0 %v477
    %573 = vmatpush1.bf16.msra.mxu0 %v476
    %574 = vmatprep.subr.bf16.mxu0 %v480
    %575 = vmatpush1.bf16.msra.mxu0 %v479
    %576 = vmatprep.subr.bf16.mxu0 %v483
    %577 = vmatpush1.bf16.msra.mxu0 %v482
    %578 = vmatprep.subr.bf16.mxu0 %v486
    %579 = vmatpush1.bf16.msra.mxu0 %v485
    %580 = vmatprep.subr.bf16.mxu0 %v489
    %581 = vmatpush1.bf16.msra.mxu0 %v488
    %582 = vmatprep.subr.bf16.mxu0 %v492
    %583 = vmatpush1.bf16.msra.mxu0 %v491
    %584 = vmatprep.subr.bf16.mxu0 %v495
    %585 = vmatpush1.bf16.msra.mxu0 %v494
    %586 = vmatprep.subr.bf16.mxu0 %v498
    %587 = vmatpush1.bf16.msra.mxu0 %v497
    %588 = vmatprep.subr.bf16.mxu0 %v501
    %589 = vmatpush1.bf16.msra.mxu0 %v500
    %590 = vmatprep.subr.bf16.mxu0 %v504
    %591 = vmatpush1.bf16.msra.mxu0 %v503
    %592 = vmatprep.subr.bf16.mxu0 %v507
    %593 = vmatpush1.bf16.msra.mxu0 %v506
    %594 = vmatprep.subr.bf16.mxu0 %v510
    %595 = vmatpush1.bf16.msra.mxu0 %v509
    %596 = vmatprep.subr.bf16.mxu0 %v513
    %597 = vmatpush1.bf16.msra.mxu0 %v512
    %598 = vmatprep.subr.bf16.mxu0 %v516
    %599 = vmatpush1.bf16.msra.mxu0 %v515
    %600 = vmatprep.subr.bf16.mxu0 %v519
    %601 = vmatpush1.bf16.msra.mxu0 %v518
    %602 = vmatprep.subr.bf16.mxu0 %v522
    %603 = vmatpush1.bf16.msra.mxu0 %v521
    %604 = vmatprep.mubr.bf16.mxu0 %v234
    %605 = vmatmul.mubr.bf16.gmra.mrb[0].mxu0 %v233
    %v606 = vpop.f32.mrb[0].mxu0
    %v607 = vadd.f32 %v304, %v606
    %v608 = vpop.f32.mrb[0].mxu0
    %v609 = vadd.f32 %v308, %v608
    %v610 = vpop.f32.mrb[0].mxu0
    %v611 = vpop.f32.mrb[0].mxu0
    %612 = vdwg.mxu0
    %613 = vmatprep.subr.bf16.mxu0 0
    %614 = vmatpush1.bf16.msra.mxu0 %v478
    %615 = vmatprep.subr.bf16.mxu0 0
    %616 = vmatpush1.bf16.msra.mxu0 %v481
    %617 = vmatprep.subr.bf16.mxu0 0
    %618 = vmatpush1.bf16.msra.mxu0 %v484
    %619 = vmatprep.subr.bf16.mxu0 0
    %620 = vmatpush1.bf16.msra.mxu0 %v487
    %621 = vmatprep.subr.bf16.mxu0 0
    %622 = vmatpush1.bf16.msra.mxu0 %v490
    %623 = vmatprep.subr.bf16.mxu0 0
    %624 = vmatpush1.bf16.msra.mxu0 %v493
    %625 = vmatprep.subr.bf16.mxu0 0
    %626 = vmatpush1.bf16.msra.mxu0 %v496
    %627 = vmatprep.subr.bf16.mxu0 0
    %628 = vmatpush1.bf16.msra.mxu0 %v499
    %629 = vmatprep.subr.bf16.mxu0 0
    %630 = vmatpush1.bf16.msra.mxu0 %v502
    %631 = vmatprep.subr.bf16.mxu0 0
    %632 = vmatpush1.bf16.msra.mxu0 %v505
    %633 = vmatprep.subr.bf16.mxu0 0
    %634 = vmatpush1.bf16.msra.mxu0 %v508
    %635 = vmatprep.subr.bf16.mxu0 0
    %636 = vmatpush1.bf16.msra.mxu0 %v511
    %637 = vmatprep.subr.bf16.mxu0 0
    %638 = vmatpush1.bf16.msra.mxu0 %v514
    %639 = vmatprep.subr.bf16.mxu0 0
    %640 = vmatpush1.bf16.msra.mxu0 %v517
    %641 = vmatprep.subr.bf16.mxu0 0
    %642 = vmatpush1.bf16.msra.mxu0 %v520
    %643 = vmatprep.subr.bf16.mxu0 0
    %644 = vmatpush1.bf16.msra.mxu0 %v523
    %645 = vmatprep.mubr.bf16.mxu0 %v234
    %646 = vmatmul.mubr.bf16.gmra.mrb[0].mxu0 %v233
    %v647 = vpop.f32.mrb[0].mxu0
    %v648 = vadd.f32 %v312, %v647
    %v649 = vpop.f32.mrb[0].mxu0
    %v650 = vpop.f32.mrb[0].mxu0
    %v651 = vpop.f32.mrb[0].mxu0
    %652 = vdwg.mxu0
    %v653 = vmax.f32 %v607, 0.0
    %v654 = vmax.f32 %v609, 0.0
    %v655 = vmax.f32 %v648, 0.0
    %v656 = vpack.c.bf16 %v653, %v653
    %v657 = vpack.c.bf16 %v654, %v654
    %v658 = vpack.c.bf16 %v655, %v655
    %v659 = vld [vmem:[#allocation8] sm:$0xf]
    %v660 = vld [vmem:[#allocation8 + $0x4] sm:$0xf]
    %v661 = vld [vmem:[#allocation8 + $0x8] sm:$0xf]
    %v662 = vld [vmem:[#allocation8 + $0xc] sm:$0xf]
    %v663 = vld [vmem:[#allocation8 + $0x10] sm:$0xf]
    %v664 = vld [vmem:[#allocation8 + $0x14] sm:$0xf]
    %v665 = vld [vmem:[#allocation8 + $0x18] sm:$0xf]
    %v666 = vld [vmem:[#allocation8 + $0x1c] sm:$0xf]
    %v667 = vld [vmem:[#allocation8 + $0x20] sm:$0xf]
    %v668 = vld [vmem:[#allocation8 + $0x24] sm:$0xf]
    %v669 = vld [vmem:[#allocation8 + $0x28] sm:$0xf]
    %v670 = vld [vmem:[#allocation8 + $0x2c] sm:$0xf]
    %v671 = vld [vmem:[#allocation8 + $0x30] sm:$0xf]
    %v672 = vld [vmem:[#allocation8 + $0x34] sm:$0xf]
    %v673 = vld [vmem:[#allocation8 + $0x38] sm:$0xf]
    %v674 = vld [vmem:[#allocation8 + $0x3c] sm:$0xf]
    %v675 = vld [vmem:[#allocation8 + $0x40] sm:$0xf]
    %v676 = vld [vmem:[#allocation8 + $0x44] sm:$0xf]
    %v677 = vld [vmem:[#allocation8 + $0x48] sm:$0xf]
    %v678 = vld [vmem:[#allocation8 + $0x4c] sm:$0xf]
    %v679 = vld [vmem:[#allocation8 + $0x50] sm:$0xf]
    %v680 = vld [vmem:[#allocation8 + $0x54] sm:$0xf]
    %v681 = vld [vmem:[#allocation8 + $0x58] sm:$0xf]
    %v682 = vld [vmem:[#allocation8 + $0x5c] sm:$0xf]
    %v683 = vld [vmem:[#allocation8 + $0x60] sm:$0xf]
    %v684 = vld [vmem:[#allocation8 + $0x64] sm:$0xf]
    %v685 = vld [vmem:[#allocation8 + $0x68] sm:$0xf]
    %v686 = vld [vmem:[#allocation8 + $0x6c] sm:$0xf]
    %v687 = vld [vmem:[#allocation8 + $0x70] sm:$0xf]
    %v688 = vld [vmem:[#allocation8 + $0x74] sm:$0xf]
    %v689 = vld [vmem:[#allocation8 + $0x78] sm:$0xf]
    %v690 = vld [vmem:[#allocation8 + $0x7c] sm:$0xf]
    %v691 = vld [vmem:[#allocation8 + $0x80] sm:$0xf]
    %v692 = vld [vmem:[#allocation8 + $0x84] sm:$0xf]
    %v693 = vld [vmem:[#allocation8 + $0x88] sm:$0xf]
    %v694 = vld [vmem:[#allocation8 + $0x8c] sm:$0xf]
    %v695 = vld [vmem:[#allocation8 + $0x90] sm:$0xf]
    %v696 = vld [vmem:[#allocation8 + $0x94] sm:$0xf]
    %v697 = vld [vmem:[#allocation8 + $0x98] sm:$0xf]
    %v698 = vld [vmem:[#allocation8 + $0x9c] sm:$0xf]
    %v699 = vld [vmem:[#allocation8 + $0xa0] sm:$0xf]
    %v700 = vld [vmem:[#allocation8 + $0xa4] sm:$0xf]
    %v701 = vld [vmem:[#allocation8 + $0xa8] sm:$0xf]
    %v702 = vld [vmem:[#allocation8 + $0xac] sm:$0xf]
    %v703 = vld [vmem:[#allocation8 + $0xb0] sm:$0xf]
    %v704 = vld [vmem:[#allocation8 + $0xb4] sm:$0xf]
    %v705 = vld [vmem:[#allocation8 + $0xb8] sm:$0xf]
    %v706 = vld [vmem:[#allocation8 + $0xbc] sm:$0xf]
    %v707 = vld [vmem:[%s6] sm:$0x1]
    %v709 = vlaneseq
    %v710 = vshrl.u32 %v709, 7
    %v711 = vsub.s32 0, %v710
    %v712 = vrot.slane %v707, %v711
    %v762 = vunpack.c.l.b16 %v659
    %v763 = vunpack.c.l.b16 %v660
    %v764 = vunpack.c.l.b16 %v661
    %v765 = vunpack.c.l.b16 %v662
    %v766 = vunpack.c.l.b16 %v663
    %v767 = vunpack.c.l.b16 %v664
    %v768 = vunpack.c.l.b16 %v665
    %v769 = vunpack.c.l.b16 %v666
    %v770 = vunpack.c.l.b16 %v667
    %v771 = vunpack.c.l.b16 %v668
    %v772 = vunpack.c.l.b16 %v669
    %v773 = vunpack.c.l.b16 %v670
    %v774 = vunpack.c.l.b16 %v671
    %v775 = vunpack.c.l.b16 %v672
    %v776 = vunpack.c.l.b16 %v673
    %v777 = vunpack.c.l.b16 %v674
    %v778 = vunpack.c.l.b16 %v675
    %v779 = vunpack.c.l.b16 %v676
    %v780 = vunpack.c.l.b16 %v677
    %v781 = vunpack.c.l.b16 %v678
    %v782 = vunpack.c.l.b16 %v679
    %v783 = vunpack.c.l.b16 %v680
    %v784 = vunpack.c.l.b16 %v681
    %v785 = vunpack.c.l.b16 %v682
    %v786 = vunpack.c.l.b16 %v683
    %v787 = vunpack.c.l.b16 %v684
    %v788 = vunpack.c.l.b16 %v685
    %v789 = vunpack.c.l.b16 %v686
    %v790 = vunpack.c.l.b16 %v687
    %v791 = vunpack.c.l.b16 %v688
    %v792 = vunpack.c.l.b16 %v689
    %v793 = vunpack.c.l.b16 %v690
    %v794 = vunpack.c.l.b16 %v691
    %v795 = vunpack.c.l.b16 %v692
    %v796 = vunpack.c.l.b16 %v693
    %v797 = vunpack.c.l.b16 %v694
    %v798 = vunpack.c.l.b16 %v695
    %v799 = vunpack.c.l.b16 %v696
    %v800 = vunpack.c.l.b16 %v697
    %v801 = vunpack.c.l.b16 %v698
    %v802 = vunpack.c.l.b16 %v699
    %v803 = vunpack.c.l.b16 %v700
    %v804 = vunpack.c.l.b16 %v701
    %v805 = vunpack.c.l.b16 %v702
    %v806 = vunpack.c.l.b16 %v703
    %v807 = vunpack.c.l.b16 %v704
    %v808 = vunpack.c.l.b16 %v705
    %v809 = vunpack.c.l.b16 %v706
    %v810 = vpack.c.b16 %v763, %v762
    %v811 = vpack.c.b16 %v765, %v764
    %v812 = vpack.c.b16 %v767, %v766
    %v813 = vpack.c.b16 %v769, %v768
    %v814 = vpack.c.b16 %v771, %v770
    %v815 = vpack.c.b16 %v773, %v772
    %v816 = vpack.c.b16 %v775, %v774
    %v817 = vpack.c.b16 %v777, %v776
    %v818 = vpack.c.b16 %v779, %v778
    %v819 = vpack.c.b16 %v781, %v780
    %v820 = vpack.c.b16 %v783, %v782
    %v821 = vpack.c.b16 %v785, %v784
    %v822 = vpack.c.b16 %v787, %v786
    %v823 = vpack.c.b16 %v789, %v788
    %v824 = vpack.c.b16 %v791, %v790
    %v825 = vpack.c.b16 %v793, %v792
    %v826 = vpack.c.b16 %v795, %v794
    %v827 = vpack.c.b16 %v797, %v796
    %v828 = vpack.c.b16 %v799, %v798
    %v829 = vpack.c.b16 %v801, %v800
    %v830 = vpack.c.b16 %v803, %v802
    %v831 = vpack.c.b16 %v805, %v804
    %v832 = vpack.c.b16 %v807, %v806
    %v833 = vpack.c.b16 %v809, %v808
    %858 = vmatprep.subr.bf16.mxu0 0
    %859 = vmatpush1.bf16.msra.mxu0 %v810
    %860 = vmatprep.subr.bf16.mxu0 0
    %861 = vmatpush1.bf16.msra.mxu0 %v811
    %862 = vmatprep.subr.bf16.mxu0 0
    %863 = vmatpush1.bf16.msra.mxu0 %v812
    %864 = vmatprep.subr.bf16.mxu0 0
    %865 = vmatpush1.bf16.msra.mxu0 %v813
    %866 = vmatprep.subr.bf16.mxu0 0
    %867 = vmatpush1.bf16.msra.mxu0 %v814
    %868 = vmatprep.subr.bf16.mxu0 0
    %869 = vmatpush1.bf16.msra.mxu0 %v815
    %870 = vmatprep.subr.bf16.mxu0 0
    %871 = vmatpush1.bf16.msra.mxu0 %v816
    %872 = vmatprep.subr.bf16.mxu0 0
    %873 = vmatpush1.bf16.msra.mxu0 %v817
    %874 = vmatprep.subr.bf16.mxu0 0
    %875 = vmatpush1.bf16.msra.mxu0 %v818
    %876 = vmatprep.subr.bf16.mxu0 0
    %877 = vmatpush1.bf16.msra.mxu0 %v819
    %878 = vmatprep.subr.bf16.mxu0 0
    %879 = vmatpush1.bf16.msra.mxu0 %v820
    %880 = vmatprep.subr.bf16.mxu0 0
    %881 = vmatpush1.bf16.msra.mxu0 %v821
    %882 = vmatprep.subr.bf16.mxu0 0
    %883 = vmatpush1.bf16.msra.mxu0 %v822
    %884 = vmatprep.subr.bf16.mxu0 0
    %885 = vmatpush1.bf16.msra.mxu0 %v823
    %886 = vmatprep.subr.bf16.mxu0 0
    %887 = vmatpush1.bf16.msra.mxu0 %v824
    %888 = vmatprep.subr.bf16.mxu0 0
    %889 = vmatpush1.bf16.msra.mxu0 %v825
    %890 = vmatprep.mubr.bf16.mxu0 %v657
    %891 = vmatmul.mubr.bf16.gmra.mrb[0].mxu0 %v656
    %v892 = vpop.f32.mrb[0].mxu0
    %v893 = vadd.f32 %v712, %v892
    %v894 = vpop.f32.mrb[0].mxu0
    %v895 = vpop.f32.mrb[0].mxu0
    %v896 = vpop.f32.mrb[0].mxu0
    %897 = vdwg.mxu0
    %898 = vmatprep.subr.bf16.mxu0 0
    %899 = vmatpush1.bf16.msra.mxu0 %v826
    %900 = vmatprep.subr.bf16.mxu0 0
    %901 = vmatpush1.bf16.msra.mxu0 %v827
    %902 = vmatprep.subr.bf16.mxu0 0
    %903 = vmatpush1.bf16.msra.mxu0 %v828
    %904 = vmatprep.subr.bf16.mxu0 0
    %905 = vmatpush1.bf16.msra.mxu0 %v829
    %906 = vmatprep.subr.bf16.mxu0 0
    %907 = vmatpush1.bf16.msra.mxu0 %v830
    %908 = vmatprep.subr.bf16.mxu0 0
    %909 = vmatpush1.bf16.msra.mxu0 %v831
    %910 = vmatprep.subr.bf16.mxu0 0
    %911 = vmatpush1.bf16.msra.mxu0 %v832
    %912 = vmatprep.subr.bf16.mxu0 0
    %913 = vmatpush1.bf16.msra.mxu0 %v833
    %914 = vmatprep.subr.bf16.mxu0 0
    %915 = vmatpush1.bf16.msra.mxu0 0
    %916 = vmatprep.subr.bf16.mxu0 0
    %917 = vmatpush1.bf16.msra.mxu0 0
    %918 = vmatprep.subr.bf16.mxu0 0
    %919 = vmatpush1.bf16.msra.mxu0 0
    %920 = vmatprep.subr.bf16.mxu0 0
    %921 = vmatpush1.bf16.msra.mxu0 0
    %922 = vmatprep.subr.bf16.mxu0 0
    %923 = vmatpush1.bf16.msra.mxu0 0
    %924 = vmatprep.subr.bf16.mxu0 0
    %925 = vmatpush1.bf16.msra.mxu0 0
    %926 = vmatprep.subr.bf16.mxu0 0
    %927 = vmatpush1.bf16.msra.mxu0 0
    %928 = vmatprep.subr.bf16.mxu0 0
    %929 = vmatpush1.bf16.msra.mxu0 0
    %930 = vmatprep.mubr.bf16.mxu0 0
    %931 = vmatmul.mubr.bf16.gmra.mrb[0].mxu0 %v658
    %v932 = vpop.f32.mrb[0].mxu0
    %v933 = vadd.f32 %v893, %v932
    %v934 = vpop.f32.mrb[0].mxu0
    %v935 = vpop.f32.mrb[0].mxu0
    %v936 = vpop.f32.mrb[0].mxu0
    %937 = vdwg.mxu0
    %v938 = vtanh.pop %v933
    %939 = vst [vmem:[#allocation10] sm:$0xff] %v938
    // Predicated region
    $region46: #{tpu_custom_call.1} parent=1 // pred_check
      _
    $region47: #{tpu_custom_call.1} parent=1 // pred_check_branch
      %941 = sbr.rel (0) target = $region49
    $region48: #{tpu_custom_call.1} parent=1 // pred_region
      %s943 = ssub.s32 128, 128
      %944 = vsyncadd [#allocation4], %s943
      %s946 = sshll.u32 [#allocation10], 4
      %s947 = int_to_ptr.vmem [resolvable:$true] %s946
      %949 = dma.vmem_to_hbm [thread:$0]  %s947, 128, %s7, [#allocation4]
    $region49: #{tpu_custom_call.1} parent=1 // pred_fallthru
      _
    // Predicated region
    $region50: #{tpu_custom_call.1} parent=1 // pred_check
      _
    $region51: #{tpu_custom_call.1} parent=1 // pred_check_branch
      %951 = sbr.rel (0) target = $region53
    $region52: #{tpu_custom_call.1} parent=1 // pred_region
      %952 = dma.done [#allocation4], 128
    $region53: #{tpu_custom_call.1} parent=1 // pred_fallthru
      _
    %953 = vsyncpa [#allocation3], 1
    %954 = vsyncpa [#allocation6], 1
    %955 = vsyncpa [#allocation9], 1
    %956 = vsyncpa [#allocation4], 1

</llo_original>
